<compile_context>
chip_gen: v6e
topology: v6e:2x2x1
jax: 0.10.0
libtpu: 0.0.40
codegen_flags: <defaults>
</compile_context>

<pallas_src>
import functools

import numpy as np

import jax
import jax.numpy as jnp
from jax.experimental import pallas as pl
from jax.experimental.pallas import tpu as pltpu

HIDDEN = 256
LOG_STD_MIN = -20.0
LOG_STD_MAX = 2.0
# log_std = LOG_STD_MIN + 0.5*(MAX-MIN)*(tanh(.)+1) == OFFSET + SCALE*tanh(.)
LOG_STD_SCALE = 0.5 * (LOG_STD_MAX - LOG_STD_MIN)     # 11.0
LOG_STD_OFFSET = LOG_STD_MIN + LOG_STD_SCALE          # -9.0


def actor_kernel(x_ref, noise_ref, w1_ref, w2_ref, w3_ref, b_ref, out_ref,
                 *, action_dim):
    a = action_dim
    tb, out_lanes = out_ref.shape

    # ---- biases (packed into one lane-dense vector, sliced at 128-aligned
    #      lane offsets) ----
    b1 = b_ref[:, 0:HIDDEN]
    b2 = b_ref[:, HIDDEN:2 * HIDDEN]
    b3 = b_ref[:, 2 * HIDDEN:2 * HIDDEN + 2 * a]

    # ---- MLP trunk: bf16 MXU matmuls, f32 accumulate, f32 elementwise ----
    x = x_ref[...].astype(jnp.bfloat16)
    h1 = jnp.maximum(
        jnp.dot(x, w1_ref[...], preferred_element_type=jnp.float32) + b1, 0.0)
    h2 = jnp.maximum(
        jnp.dot(h1.astype(jnp.bfloat16), w2_ref[...],
                preferred_element_type=jnp.float32) + b2, 0.0)

    # ---- merged head: one dot, then in-vreg slice into mu / log_std ----
    y = jnp.dot(h2.astype(jnp.bfloat16), w3_ref[...],
                preferred_element_type=jnp.float32) + b3
    mu = y[:, :a]
    ls = y[:, a:2 * a]

    log_std = LOG_STD_OFFSET + LOG_STD_SCALE * jnp.tanh(ls)
    std = jnp.exp(log_std)

    # ---- reparameterization (noise drawn upstream, torch.randn_like) ----
    noise = noise_ref[...]
    pi = mu + noise * std

    # ---- gaussian_likelihood ----
    pre_sum = -0.5 * noise * noise - log_std
    log_pi = (jnp.sum(pre_sum, axis=-1, keepdims=True)
              - jnp.float32(0.5 * np.log(2.0 * np.pi) * a))

    # ---- apply_squashing_func ----
    mu_t = jnp.tanh(mu)
    pi_t = jnp.tanh(pi)
    corr = jnp.log(jnp.maximum(1.0 - pi_t * pi_t, 0.0) + 1e-6)
    log_pi = log_pi - jnp.sum(corr, axis=-1, keepdims=True)

    # ---- single unmasked lane-dense store: [mu | pi | log_pi | 0...] ----
    pad = jnp.zeros((tb, out_lanes - (2 * a + 1)), jnp.float32)
    out_ref[...] = jnp.concatenate([mu_t, pi_t, log_pi, pad], axis=-1)


def _tensorcores_per_chip():
    """Best-effort TC count; falls back to 1 (v5e/v6e / CPU interpret)."""
    try:
        kind = jax.devices()[0].device_kind.lower()
    except Exception:
        return 1
    return 2 if ("v7" in kind or "7x" in kind) else 1


def actor_forward(x, noise, params, action_dim):
    """Returns (mu, pi, log_pi) -- tanh-squashed, as in the PyTorch module."""
    B, state_dim = x.shape
    w1, w2, w3, b_all = params
    a = action_dim
    out_lanes = ((2 * a + 1 + 127) // 128) * 128   # lane-dense output width

    # Tile-per-TensorCore gridding: one big tile on 1-TC chips, two tiles on
    # v7x (only when the batch is big enough and keeps 8-row alignment).
    n_tc = _tensorcores_per_chip()
    if n_tc >= 2 and B >= 64 and B % 2 == 0 and (B // 2) % 8 == 0:
        tile_b, nb = B // 2, 2
    else:
        tile_b, nb = B, 1

    kernel = functools.partial(actor_kernel, action_dim=a)

    flops = int(2 * B * (state_dim * HIDDEN + HIDDEN * HIDDEN + HIDDEN * 2 * a))
    transcendentals = int(B * 5 * a)    # tanh(ls), exp, tanh(mu), tanh(pi), log
    bytes_accessed = int(
        2 * (state_dim * HIDDEN + HIDDEN * HIDDEN + HIDDEN * 2 * a)   # bf16 weights
        + 4 * (B * state_dim + B * a + (2 * HIDDEN + 2 * a) + B * out_lanes))

    grid_spec = pltpu.PrefetchScalarGridSpec(
        num_scalar_prefetch=0,
        grid=(nb,),
        in_specs=[
            pl.BlockSpec((tile_b, state_dim), lambda i: (i, 0)),              # x
            pl.BlockSpec((tile_b, a), lambda i: (i, 0)),                      # noise
            pl.BlockSpec((state_dim, HIDDEN), lambda i: (0, 0)),              # w1
            pl.BlockSpec((HIDDEN, HIDDEN), lambda i: (0, 0)),                 # w2
            pl.BlockSpec((HIDDEN, 2 * a), lambda i: (0, 0)),                  # w3 (merged heads)
            pl.BlockSpec((1, 2 * HIDDEN + 2 * a), lambda i: (0, 0)),          # packed biases
        ],
        out_specs=pl.BlockSpec((tile_b, out_lanes), lambda i: (i, 0)),
    )

    fused = pl.pallas_call(
        kernel,
        out_shape=jax.ShapeDtypeStruct((B, out_lanes), jnp.float32),
        grid_spec=grid_spec,
        compiler_params=pltpu.CompilerParams(
            dimension_semantics=("parallel",)),
        cost_estimate=pl.CostEstimate(
            flops=flops,
            transcendentals=transcendentals,
            bytes_accessed=bytes_accessed),
    )(x, noise, w1, w2, w3, b_all)

    mu = fused[:, :a]
    pi = fused[:, a:2 * a]
    log_pi = fused[:, 2 * a:2 * a + 1]
    return mu, pi, log_pi


def init_params(key, state_dim, action_dim):
    """Orthogonal weights / zero biases (matches weight_init).

    Weights are stored (in, out) and cast to bf16 (MXU-native); biases stay
    f32 and are packed into a single (1, 2*HIDDEN + 2*action_dim) array.
    """
    k1, k2, k3 = jax.random.split(key, 3)
    orth = jax.nn.initializers.orthogonal()
    w1 = orth(k1, (state_dim, HIDDEN), jnp.float32).astype(jnp.bfloat16)
    w2 = orth(k2, (HIDDEN, HIDDEN), jnp.float32).astype(jnp.bfloat16)
    w3 = orth(k3, (HIDDEN, 2 * action_dim), jnp.float32).astype(jnp.bfloat16)
    b_all = jnp.zeros((1, 2 * HIDDEN + 2 * action_dim), jnp.float32)
    return (w1, w2, w3, b_all)


def reference_forward(x, noise, params, action_dim):
    """Pure-JAX reference mirroring the PyTorch forward (same bf16 casts)."""
    w1, w2, w3, b_all = params
    a = action_dim
    b1 = b_all[:, :HIDDEN]
    b2 = b_all[:, HIDDEN:2 * HIDDEN]
    b3 = b_all[:, 2 * HIDDEN:2 * HIDDEN + 2 * a]

    h = jax.nn.relu(jnp.dot(x.astype(jnp.bfloat16), w1,
                            preferred_element_type=jnp.float32) + b1)
    h = jax.nn.relu(jnp.dot(h.astype(jnp.bfloat16), w2,
                            preferred_element_type=jnp.float32) + b2)
    y = jnp.dot(h.astype(jnp.bfloat16), w3,
                preferred_element_type=jnp.float32) + b3
    mu, ls = y[:, :a], y[:, a:2 * a]

    log_std = jnp.tanh(ls)
    log_std = LOG_STD_MIN + 0.5 * (LOG_STD_MAX - LOG_STD_MIN) * (log_std + 1.0)
    std = jnp.exp(log_std)
    pi = mu + noise * std
    pre_sum = -0.5 * noise ** 2 - log_std
    log_pi = (jnp.sum(pre_sum, -1, keepdims=True)
              - 0.5 * np.log(2 * np.pi) * a)
    mu_t, pi_t = jnp.tanh(mu), jnp.tanh(pi)
    log_pi = log_pi - jnp.sum(jnp.log(jax.nn.relu(1 - pi_t ** 2) + 1e-6),
                              -1, keepdims=True)
    return mu_t, pi_t, log_pi


if __name__ == "__main__":
    state_dim = 32
    action_dim = 4
    batch = 8

    key = jax.random.PRNGKey(0)
    k_params, k_x, k_noise = jax.random.split(key, 3)

    params = init_params(k_params, state_dim, action_dim)
    x = jax.random.normal(k_x, (batch, state_dim), jnp.float32)
    # torch.randn_like(mu) equivalent -- drawn upstream, fed to the kernel.
    noise = jax.random.normal(k_noise, (batch, action_dim), jnp.float32)

    mu, pi, log_pi = actor_forward(x, noise, params, action_dim)
    jax.block_until_ready((mu, pi, log_pi))

    # Validate against the pure-JAX reference using the same noise sample.
    mu_ref, pi_ref, log_pi_ref = reference_forward(x, noise, params, action_dim)
    np.testing.assert_allclose(np.asarray(mu), np.asarray(mu_ref),
                               atol=1e-4, rtol=1e-4)
    np.testing.assert_allclose(np.asarray(pi), np.asarray(pi_ref),
                               atol=1e-4, rtol=1e-4)
    np.testing.assert_allclose(np.asarray(log_pi), np.asarray(log_pi_ref),
                               atol=1e-3, rtol=1e-3)

    print("KERNEL_OK")
</pallas_src>

<mosaic_0001>
module attributes {stable_mosaic.version = 11 : i64} {
  func.func @actor_kernel(%arg0: i32, %arg1: memref<8x32xf32, #tpu.memory_space<vmem>>, %arg2: memref<8x4xf32, #tpu.memory_space<vmem>>, %arg3: memref<32x256xbf16, #tpu.memory_space<vmem>>, %arg4: memref<256x256xbf16, #tpu.memory_space<vmem>>, %arg5: memref<256x8xbf16, #tpu.memory_space<vmem>>, %arg6: memref<1x520xf32, #tpu.memory_space<vmem>>, %arg7: memref<8x128xf32, #tpu.memory_space<vmem>>) attributes {dimension_semantics = [#tpu.dimension_semantics<parallel>], iteration_bounds = array<i64: 1>, scalar_prefetch = 0 : i64, scratch_operands = 0 : i64, tpu.core_type = #tpu.core_type<tc>, window_params = [{transform_indices = @transform_0, window_bounds = array<i64: 8, 32>}, {transform_indices = @transform_1, window_bounds = array<i64: 8, 4>}, {pipeline_mode = #tpu.pipeline_mode<synchronous>, transform_indices = @transform_2, window_bounds = array<i64: 32, 256>}, {pipeline_mode = #tpu.pipeline_mode<synchronous>, transform_indices = @transform_3, window_bounds = array<i64: 256, 256>}, {pipeline_mode = #tpu.pipeline_mode<synchronous>, transform_indices = @transform_4, window_bounds = array<i64: 256, 8>}, {pipeline_mode = #tpu.pipeline_mode<synchronous>, transform_indices = @transform_5, window_bounds = array<i64: 1, 520>}, {transform_indices = @transform_6, window_bounds = array<i64: 8, 128>}]} {
    %c0 = arith.constant 0 : index
    %c0_0 = arith.constant 0 : index
    %0 = vector.load %arg6[%c0, %c0_0] : memref<1x520xf32, #tpu.memory_space<vmem>>, vector<1x256xf32>
    %c0_1 = arith.constant 0 : index
    %c256 = arith.constant 256 : index
    %1 = vector.load %arg6[%c0_1, %c256] : memref<1x520xf32, #tpu.memory_space<vmem>>, vector<1x256xf32>
    %c0_2 = arith.constant 0 : index
    %c512 = arith.constant 512 : index
    %2 = vector.load %arg6[%c0_2, %c512] : memref<1x520xf32, #tpu.memory_space<vmem>>, vector<1x8xf32>
    %c0_3 = arith.constant 0 : index
    %c0_4 = arith.constant 0 : index
    %3 = vector.load %arg1[%c0_3, %c0_4] : memref<8x32xf32, #tpu.memory_space<vmem>>, vector<8x32xf32>
    %4 = arith.truncf %3 : vector<8x32xf32> to vector<8x32xbf16>
    %c0_5 = arith.constant 0 : index
    %c0_6 = arith.constant 0 : index
    %5 = vector.load %arg3[%c0_5, %c0_6] : memref<32x256xbf16, #tpu.memory_space<vmem>>, vector<32x256xbf16>
    %cst = arith.constant dense<0.000000e+00> : vector<8x256xf32>
    %6 = tpu.matmul %4, %5, %cst {dimension_numbers = #tpu.dot_dimension_numbers<[1], [0], [0], [1], [0, 0, 1, 1], [], []>} : vector<8x32xbf16>, vector<32x256xbf16>, vector<8x256xf32> -> vector<8x256xf32>
    %7 = vector.broadcast %0 : vector<1x256xf32> to vector<8x256xf32>
    %8 = arith.addf %6, %7 : vector<8x256xf32>
    %cst_7 = arith.constant 0.000000e+00 : f32
    %9 = vector.broadcast %cst_7 : f32 to vector<8x256xf32>
    %10 = arith.maximumf %8, %9 : vector<8x256xf32>
    %11 = arith.truncf %10 : vector<8x256xf32> to vector<8x256xbf16>
    %c0_8 = arith.constant 0 : index
    %c0_9 = arith.constant 0 : index
    %12 = vector.load %arg4[%c0_8, %c0_9] : memref<256x256xbf16, #tpu.memory_space<vmem>>, vector<256x256xbf16>
    %cst_10 = arith.constant dense<0.000000e+00> : vector<8x256xf32>
    %13 = tpu.matmul %11, %12, %cst_10 {dimension_numbers = #tpu.dot_dimension_numbers<[1], [0], [0], [1], [0, 0, 1, 1], [], []>} : vector<8x256xbf16>, vector<256x256xbf16>, vector<8x256xf32> -> vector<8x256xf32>
    %14 = vector.broadcast %1 : vector<1x256xf32> to vector<8x256xf32>
    %15 = arith.addf %13, %14 : vector<8x256xf32>
    %cst_11 = arith.constant 0.000000e+00 : f32
    %16 = vector.broadcast %cst_11 : f32 to vector<8x256xf32>
    %17 = arith.maximumf %15, %16 : vector<8x256xf32>
    %18 = arith.truncf %17 : vector<8x256xf32> to vector<8x256xbf16>
    %c0_12 = arith.constant 0 : index
    %c0_13 = arith.constant 0 : index
    %19 = vector.load %arg5[%c0_12, %c0_13] : memref<256x8xbf16, #tpu.memory_space<vmem>>, vector<256x8xbf16>
    %cst_14 = arith.constant dense<0.000000e+00> : vector<8x8xf32>
    %20 = tpu.matmul %18, %19, %cst_14 {dimension_numbers = #tpu.dot_dimension_numbers<[1], [0], [0], [1], [0, 0, 1, 1], [], []>} : vector<8x256xbf16>, vector<256x8xbf16>, vector<8x8xf32> -> vector<8x8xf32>
    %21 = vector.broadcast %2 : vector<1x8xf32> to vector<8x8xf32>
    %22 = arith.addf %20, %21 : vector<8x8xf32>
    %23 = vector.extract_strided_slice %22 {offsets = [0, 0], sizes = [8, 4], strides = [1, 1]} : vector<8x8xf32> to vector<8x4xf32>
    %24 = vector.extract_strided_slice %22 {offsets = [0, 4], sizes = [8, 4], strides = [1, 1]} : vector<8x8xf32> to vector<8x4xf32>
    %25 = math.tanh %24 : vector<8x4xf32>
    %cst_15 = arith.constant 1.100000e+01 : f32
    %26 = vector.broadcast %cst_15 : f32 to vector<8x4xf32>
    %27 = arith.mulf %26, %25 : vector<8x4xf32>
    %cst_16 = arith.constant -9.000000e+00 : f32
    %28 = vector.broadcast %cst_16 : f32 to vector<8x4xf32>
    %29 = arith.addf %28, %27 : vector<8x4xf32>
    %30 = math.exp %29 : vector<8x4xf32>
    %c0_17 = arith.constant 0 : index
    %c0_18 = arith.constant 0 : index
    %31 = vector.load %arg2[%c0_17, %c0_18] : memref<8x4xf32, #tpu.memory_space<vmem>>, vector<8x4xf32>
    %32 = arith.mulf %31, %30 : vector<8x4xf32>
    %33 = arith.addf %23, %32 : vector<8x4xf32>
    %cst_19 = arith.constant -5.000000e-01 : f32
    %34 = vector.broadcast %cst_19 : f32 to vector<8x4xf32>
    %35 = arith.mulf %34, %31 : vector<8x4xf32>
    %36 = arith.mulf %35, %31 : vector<8x4xf32>
    %37 = arith.subf %36, %29 : vector<8x4xf32>
    %cst_20 = arith.constant dense<0.000000e+00> : vector<8xf32>
    %38 = vector.multi_reduction <add>, %37, %cst_20 [1] : vector<8x4xf32> to vector<8xf32>
    %39 = vector.shape_cast %38 : vector<8xf32> to vector<8x1xf32>
    %cst_21 = arith.constant 3.67575407 : f32
    %40 = vector.broadcast %cst_21 : f32 to vector<8x1xf32>
    %41 = arith.subf %39, %40 : vector<8x1xf32>
    %42 = math.tanh %23 : vector<8x4xf32>
    %43 = math.tanh %33 : vector<8x4xf32>
    %44 = arith.mulf %43, %43 : vector<8x4xf32>
    %cst_22 = arith.constant 1.000000e+00 : f32
    %45 = vector.broadcast %cst_22 : f32 to vector<8x4xf32>
    %46 = arith.subf %45, %44 : vector<8x4xf32>
    %cst_23 = arith.constant 0.000000e+00 : f32
    %47 = vector.broadcast %cst_23 : f32 to vector<8x4xf32>
    %48 = arith.maximumf %46, %47 : vector<8x4xf32>
    %cst_24 = arith.constant 9.99999997E-7 : f32
    %49 = vector.broadcast %cst_24 : f32 to vector<8x4xf32>
    %50 = arith.addf %48, %49 : vector<8x4xf32>
    %51 = math.log %50 : vector<8x4xf32>
    %cst_25 = arith.constant dense<0.000000e+00> : vector<8xf32>
    %52 = vector.multi_reduction <add>, %51, %cst_25 [1] : vector<8x4xf32> to vector<8xf32>
    %53 = vector.shape_cast %52 : vector<8xf32> to vector<8x1xf32>
    %54 = arith.subf %41, %53 : vector<8x1xf32>
    %cst_26 = arith.constant 0.000000e+00 : f32
    %55 = vector.broadcast %cst_26 : f32 to vector<8x119xf32>
    %56 = tpu.concatenate %42, %43, %54, %55 in 1 : vector<8x4xf32>, vector<8x4xf32>, vector<8x1xf32>, vector<8x119xf32> -> vector<8x128xf32>
    %c0_27 = arith.constant 0 : index
    %c0_28 = arith.constant 0 : index
    %57 = vector.load %arg7[%c0_27, %c0_28] : memref<8x128xf32, #tpu.memory_space<vmem>>, vector<8x128xf32>
    tpu.vector_store %arg7[%c0_27, %c0_28], %56 {strides = array<i32>} : memref<8x128xf32, #tpu.memory_space<vmem>>, vector<8x128xf32>,
    return
  }
  func.func @transform_0(%arg0: i32) -> (i32, i32) {
    %c0_i32 = arith.constant 0 : i32
    %c0_i32_0 = arith.constant 0 : i32
    return %arg0, %c0_i32 : i32, i32
  }
  func.func @transform_1(%arg0: i32) -> (i32, i32) {
    %c0_i32 = arith.constant 0 : i32
    %c0_i32_0 = arith.constant 0 : i32
    return %arg0, %c0_i32 : i32, i32
  }
  func.func @transform_2(%arg0: i32) -> (i32, i32) {
    %c0_i32 = arith.constant 0 : i32
    %c0_i32_0 = arith.constant 0 : i32
    %c0_i32_1 = arith.constant 0 : i32
    return %c0_i32, %c0_i32_0 : i32, i32
  }
  func.func @transform_3(%arg0: i32) -> (i32, i32) {
    %c0_i32 = arith.constant 0 : i32
    %c0_i32_0 = arith.constant 0 : i32
    %c0_i32_1 = arith.constant 0 : i32
    return %c0_i32, %c0_i32_0 : i32, i32
  }
  func.func @transform_4(%arg0: i32) -> (i32, i32) {
    %c0_i32 = arith.constant 0 : i32
    %c0_i32_0 = arith.constant 0 : i32
    %c0_i32_1 = arith.constant 0 : i32
    return %c0_i32, %c0_i32_0 : i32, i32
  }
  func.func @transform_5(%arg0: i32) -> (i32, i32) {
    %c0_i32 = arith.constant 0 : i32
    %c0_i32_0 = arith.constant 0 : i32
    %c0_i32_1 = arith.constant 0 : i32
    return %c0_i32, %c0_i32_0 : i32, i32
  }
  func.func @transform_6(%arg0: i32) -> (i32, i32) {
    %c0_i32 = arith.constant 0 : i32
    %c0_i32_0 = arith.constant 0 : i32
    return %arg0, %c0_i32 : i32, i32
  }
}

</mosaic_0001>

<llo_original>
// kernel: tpu_custom_call.1
$region0: #{tpu_custom_call.1}
  #allocation0 [shape = 'u32[]', space=smem, size = 0x4, offset = 0x4, fixed_abs, tag = 'smem constant byte address 0x4 - core index']
  #allocation1 [shape = 'u32[144,128]{1,0:T(1,128)}', space=vmem, size = 0x12000, scoped, tag = 'internal scratch']
  %s0 = inlined_call_operand.vmem [shape: f32[8,32], index: 0, kind: input, shape index: {}]
  %s1 = inlined_call_operand.vmem [shape: f32[8,4], index: 1, kind: input, shape index: {}]
  %s2 = inlined_call_operand.vmem [shape: bf16[32,256], index: 2, kind: input, shape index: {}]
  %s3 = inlined_call_operand.hbm [shape: bf16[256,256], index: 3, kind: input, shape index: {}]
  %s4 = inlined_call_operand.vmem [shape: bf16[256,8], index: 4, kind: input, shape index: {}]
  %s5 = inlined_call_operand.vmem [shape: f32[1,520], index: 5, kind: input, shape index: {}]
  %s6 = inlined_call_operand.hbm [shape: f32[8,128], index: 6, kind: output, shape index: {}]
  %s7 = sld [smem:[#allocation0]]
  $region38: #{tpu_custom_call.1} parent=0
    _
  %s9 = ssub.s32 1, %s7
  %s10 = scalar_select 0, %s9, %s7
  $region1: #{tpu_custom_call.1} parent=0
    #allocation2 [shape = 'u8[131072]{0}', space=vmem, size = 0x20000, scoped, tag = 'input window, operand 3, single buffered']
    #allocation3 [shape = 's32[1]{0}', space=sflag, size = 0x4, scoped, tag = 'scoped memory for tpu_custom_call.1']
    #allocation4 [shape = 's32[1]{0}', space=sflag, size = 0x4, scoped, tag = 'scoped memory for tpu_custom_call.1']
    #allocation5 [shape = 'u8[4096]{0}', space=vmem, size = 0x1000, scoped, tag = 'output window, operand 0, single buffered']
    %11 = vsyncpa [#allocation3], 0
    %12 = vsyncpa [#allocation4], 0
    // Predicated region
    $region2: #{tpu_custom_call.1} parent=1 // pred_check
      _
    $region3: #{tpu_custom_call.1} parent=1 // pred_check_branch
      %14 = sbr.rel (0) target = $region5
    $region4: #{tpu_custom_call.1} parent=1 // pred_region
      _
    $region5: #{tpu_custom_call.1} parent=1 // pred_fallthru
      _
    // Predicated region
    $region6: #{tpu_custom_call.1} parent=1 // pred_check
      _
    $region7: #{tpu_custom_call.1} parent=1 // pred_check_branch
      %16 = sbr.rel (0) target = $region9
    $region8: #{tpu_custom_call.1} parent=1 // pred_region
      _
    $region9: #{tpu_custom_call.1} parent=1 // pred_fallthru
      _
    // Predicated region
    $region10: #{tpu_custom_call.1} parent=1 // pred_check
      _
    $region11: #{tpu_custom_call.1} parent=1 // pred_check_branch
      %18 = sbr.rel (0) target = $region13
    $region12: #{tpu_custom_call.1} parent=1 // pred_region
      _
    $region13: #{tpu_custom_call.1} parent=1 // pred_fallthru
      _
    // Predicated region
    $region14: #{tpu_custom_call.1} parent=1 // pred_check
      _
    $region15: #{tpu_custom_call.1} parent=1 // pred_check_branch
      %20 = sbr.rel (0) target = $region17
    $region16: #{tpu_custom_call.1} parent=1 // pred_region
      %s22 = ssub.s32 4096, 4096
      %23 = vsyncadd [#allocation3], %s22
      %s24 = sshll.u32 [#allocation2], 4
      %s25 = int_to_ptr.vmem [resolvable:$true] %s24
      %30 = dma.hbm_to_vmem [thread:$0]  %s3, 4096, %s25, [#allocation3], 128, 128, 8
    $region17: #{tpu_custom_call.1} parent=1 // pred_fallthru
      _
    // Predicated region
    $region18: #{tpu_custom_call.1} parent=1 // pred_check
      _
    $region19: #{tpu_custom_call.1} parent=1 // pred_check_branch
      %32 = sbr.rel (0) target = $region21
    $region20: #{tpu_custom_call.1} parent=1 // pred_region
      _
    $region21: #{tpu_custom_call.1} parent=1 // pred_fallthru
      _
    // Predicated region
    $region22: #{tpu_custom_call.1} parent=1 // pred_check
      _
    $region23: #{tpu_custom_call.1} parent=1 // pred_check_branch
      %34 = sbr.rel (0) target = $region25
    $region24: #{tpu_custom_call.1} parent=1 // pred_region
      _
    $region25: #{tpu_custom_call.1} parent=1 // pred_fallthru
      _
    // Predicated region
    $region26: #{tpu_custom_call.1} parent=1 // pred_check
      _
    $region27: #{tpu_custom_call.1} parent=1 // pred_check_branch
      %36 = sbr.rel (0) target = $region29
    $region28: #{tpu_custom_call.1} parent=1 // pred_region
      %37 = dma.done [#allocation3], 4096
    $region29: #{tpu_custom_call.1} parent=1 // pred_fallthru
      _
    %v39 = vld [vmem:[%s5] sm:$0x3]
    %v40 = vld [vmem:[%s5 + $0x2] sm:$0x3]
    %v41 = vld [vmem:[%s5 + $0x4] sm:$0x1]
    %v42 = vld [vmem:[%s0] sm:$0xff]
    %v43 = vpack.c.bf16 %v42, %v42
    %v44 = vld [vmem:[%s2] sm:$0xff]
    %v45 = vld [vmem:[%s2 + $0x8] sm:$0xff]
    %v46 = vld [vmem:[%s2 + $0x10] sm:$0xff]
    %v47 = vld [vmem:[%s2 + $0x18] sm:$0xff]
    %v49 = vlaneseq
    %v50 = vshrl.u32 %v49, 7
    %v51 = vsub.s32 0, %v50
    %v52 = vrot.slane %v39, %v51
    %v53 = vlaneseq
    %v54 = vshrl.u32 %v53, 7
    %v55 = vsub.s32 1, %v54
    %v56 = vrot.slane %v39, %v55
    %v63 = vunpack.c.l.b16 %v44
    %v64 = vunpack.c.h.b16 %v44
    %v65 = vunpack.c.l.b16 %v45
    %v66 = vunpack.c.h.b16 %v45
    %v67 = vunpack.c.l.b16 %v46
    %v68 = vunpack.c.h.b16 %v46
    %v69 = vunpack.c.l.b16 %v47
    %v70 = vunpack.c.h.b16 %v47
    %v71 = vpack.c.b16 %v65, %v63
    %v72 = vpack.c.b16 %v66, %v64
    %v73 = vpack.c.b16 %v69, %v67
    %v74 = vpack.c.b16 %v70, %v68
    %vm79 = vcmask 261120
    %v81 = vsel %vm79, %v43, 0
    %83 = vmatprep.subr.bf16.mxu0 0
    %84 = vmatpush1.bf16.msra.mxu0 0
    %85 = vmatprep.subr.bf16.mxu0 0
    %86 = vmatpush1.bf16.msra.mxu0 0
    %87 = vmatprep.subr.bf16.mxu0 0
    %88 = vmatpush1.bf16.msra.mxu0 0
    %89 = vmatprep.subr.bf16.mxu0 0
    %90 = vmatpush1.bf16.msra.mxu0 0
    %91 = vmatprep.subr.bf16.mxu0 0
    %92 = vmatpush1.bf16.msra.mxu0 0
    %93 = vmatprep.subr.bf16.mxu0 0
    %94 = vmatpush1.bf16.msra.mxu0 0
    %95 = vmatprep.subr.bf16.mxu0 %v74
    %96 = vmatpush1.bf16.msra.mxu0 %v73
    %97 = vmatprep.subr.bf16.mxu0 %v72
    %98 = vmatpush1.bf16.msra.mxu0 %v71
    %99 = vmatprep.subr.bf16.mxu0 0
    %100 = vmatpush2.bf16.msra.mxu0 0
    %101 = vmatprep.subr.bf16.mxu0 0
    %102 = vmatpush2.bf16.msra.mxu0 0
    %103 = vmatprep.subr.bf16.mxu0 0
    %104 = vmatpush2.bf16.msra.mxu0 0
    %105 = vmatprep.subr.bf16.mxu0 0
    %106 = vmatpush2.bf16.msra.mxu0 0
    %107 = vmatprep.subr.bf16.mxu0 0
    %108 = vmatpush2.bf16.msra.mxu0 0
    %109 = vmatprep.subr.bf16.mxu0 0
    %110 = vmatpush2.bf16.msra.mxu0 0
    %111 = vmatprep.subr.bf16.mxu0 0
    %112 = vmatpush2.bf16.msra.mxu0 0
    %113 = vmatprep.subr.bf16.mxu0 0
    %114 = vmatpush2.bf16.msra.mxu0 0
    %115 = vmatprep.mubr.bf16.mxu0 0
    %116 = vmatmul.mubr.bf16.gmra.mxu0 %v81
    %v117 = vpop.f32.mrf.mxu0
    %v118 = vadd.f32 %v52, %v117
    %v119 = vpop.f32.mrf.mxu0
    %v120 = vadd.f32 %v56, %v119
    %v121 = vpop.f32.mrf.mxu0
    %v122 = vpop.f32.mrf.mxu0
    %123 = vdwg.mxu0
    %v124 = vmax.f32 %v118, 0.0
    %v125 = vmax.f32 %v120, 0.0
    %v126 = vpack.c.bf16 %v124, %v124
    %v127 = vpack.c.bf16 %v125, %v125
    %v128 = vld [vmem:[#allocation2] sm:$0xff]
    %v129 = vld [vmem:[#allocation2 + $0x8] sm:$0xff]
    %v130 = vld [vmem:[#allocation2 + $0x10] sm:$0xff]
    %v131 = vld [vmem:[#allocation2 + $0x18] sm:$0xff]
    %v132 = vld [vmem:[#allocation2 + $0x20] sm:$0xff]
    %v133 = vld [vmem:[#allocation2 + $0x28] sm:$0xff]
    %v134 = vld [vmem:[#allocation2 + $0x30] sm:$0xff]
    %v135 = vld [vmem:[#allocation2 + $0x38] sm:$0xff]
    %v136 = vld [vmem:[#allocation2 + $0x40] sm:$0xff]
    %v137 = vld [vmem:[#allocation2 + $0x48] sm:$0xff]
    %v138 = vld [vmem:[#allocation2 + $0x50] sm:$0xff]
    %v139 = vld [vmem:[#allocation2 + $0x58] sm:$0xff]
    %v140 = vld [vmem:[#allocation2 + $0x60] sm:$0xff]
    %v141 = vld [vmem:[#allocation2 + $0x68] sm:$0xff]
    %v142 = vld [vmem:[#allocation2 + $0x70] sm:$0xff]
    %v143 = vld [vmem:[#allocation2 + $0x78] sm:$0xff]
    %v144 = vld [vmem:[#allocation2 + $0x80] sm:$0xff]
    %v145 = vld [vmem:[#allocation2 + $0x88] sm:$0xff]
    %v146 = vld [vmem:[#allocation2 + $0x90] sm:$0xff]
    %v147 = vld [vmem:[#allocation2 + $0x98] sm:$0xff]
    %v148 = vld [vmem:[#allocation2 + $0xa0] sm:$0xff]
    %v149 = vld [vmem:[#allocation2 + $0xa8] sm:$0xff]
    %v150 = vld [vmem:[#allocation2 + $0xb0] sm:$0xff]
    %v151 = vld [vmem:[#allocation2 + $0xb8] sm:$0xff]
    %v152 = vld [vmem:[#allocation2 + $0xc0] sm:$0xff]
    %v153 = vld [vmem:[#allocation2 + $0xc8] sm:$0xff]
    %v154 = vld [vmem:[#allocation2 + $0xd0] sm:$0xff]
    %v155 = vld [vmem:[#allocation2 + $0xd8] sm:$0xff]
    %v156 = vld [vmem:[#allocation2 + $0xe0] sm:$0xff]
    %v157 = vld [vmem:[#allocation2 + $0xe8] sm:$0xff]
    %v158 = vld [vmem:[#allocation2 + $0xf0] sm:$0xff]
    %v159 = vld [vmem:[#allocation2 + $0xf8] sm:$0xff]
    %v161 = vlaneseq
    %v162 = vshrl.u32 %v161, 7
    %v163 = vsub.s32 0, %v162
    %v164 = vrot.slane %v40, %v163
    %v165 = vlaneseq
    %v166 = vshrl.u32 %v165, 7
    %v167 = vsub.s32 1, %v166
    %v168 = vrot.slane %v40, %v167
    %v203 = vunpack.c.l.b16 %v128
    %v204 = vunpack.c.h.b16 %v128
    %v205 = vunpack.c.l.b16 %v129
    %v206 = vunpack.c.h.b16 %v129
    %v207 = vunpack.c.l.b16 %v130
    %v208 = vunpack.c.h.b16 %v130
    %v209 = vunpack.c.l.b16 %v131
    %v210 = vunpack.c.h.b16 %v131
    %v211 = vunpack.c.l.b16 %v132
    %v212 = vunpack.c.h.b16 %v132
    %v213 = vunpack.c.l.b16 %v133
    %v214 = vunpack.c.h.b16 %v133
    %v215 = vunpack.c.l.b16 %v134
    %v216 = vunpack.c.h.b16 %v134
    %v217 = vunpack.c.l.b16 %v135
    %v218 = vunpack.c.h.b16 %v135
    %v219 = vunpack.c.l.b16 %v136
    %v220 = vunpack.c.h.b16 %v136
    %v221 = vunpack.c.l.b16 %v137
    %v222 = vunpack.c.h.b16 %v137
    %v223 = vunpack.c.l.b16 %v138
    %v224 = vunpack.c.h.b16 %v138
    %v225 = vunpack.c.l.b16 %v139
    %v226 = vunpack.c.h.b16 %v139
    %v227 = vunpack.c.l.b16 %v140
    %v228 = vunpack.c.h.b16 %v140
    %v229 = vunpack.c.l.b16 %v141
    %v230 = vunpack.c.h.b16 %v141
    %v231 = vunpack.c.l.b16 %v142
    %v232 = vunpack.c.h.b16 %v142
    %v233 = vunpack.c.l.b16 %v143
    %v234 = vunpack.c.h.b16 %v143
    %v235 = vunpack.c.l.b16 %v144
    %v236 = vunpack.c.h.b16 %v144
    %v237 = vunpack.c.l.b16 %v145
    %v238 = vunpack.c.h.b16 %v145
    %v239 = vunpack.c.l.b16 %v146
    %v240 = vunpack.c.h.b16 %v146
    %v241 = vunpack.c.l.b16 %v147
    %v242 = vunpack.c.h.b16 %v147
    %v243 = vunpack.c.l.b16 %v148
    %v244 = vunpack.c.h.b16 %v148
    %v245 = vunpack.c.l.b16 %v149
    %v246 = vunpack.c.h.b16 %v149
    %v247 = vunpack.c.l.b16 %v150
    %v248 = vunpack.c.h.b16 %v150
    %v249 = vunpack.c.l.b16 %v151
    %v250 = vunpack.c.h.b16 %v151
    %v251 = vunpack.c.l.b16 %v152
    %v252 = vunpack.c.h.b16 %v152
    %v253 = vunpack.c.l.b16 %v153
    %v254 = vunpack.c.h.b16 %v153
    %v255 = vunpack.c.l.b16 %v154
    %v256 = vunpack.c.h.b16 %v154
    %v257 = vunpack.c.l.b16 %v155
    %v258 = vunpack.c.h.b16 %v155
    %v259 = vunpack.c.l.b16 %v156
    %v260 = vunpack.c.h.b16 %v156
    %v261 = vunpack.c.l.b16 %v157
    %v262 = vunpack.c.h.b16 %v157
    %v263 = vunpack.c.l.b16 %v158
    %v264 = vunpack.c.h.b16 %v158
    %v265 = vunpack.c.l.b16 %v159
    %v266 = vunpack.c.h.b16 %v159
    %v267 = vpack.c.b16 %v205, %v203
    %v268 = vpack.c.b16 %v206, %v204
    %v269 = vpack.c.b16 %v209, %v207
    %v270 = vpack.c.b16 %v210, %v208
    %v271 = vpack.c.b16 %v213, %v211
    %v272 = vpack.c.b16 %v214, %v212
    %v273 = vpack.c.b16 %v217, %v215
    %v274 = vpack.c.b16 %v218, %v216
    %v275 = vpack.c.b16 %v221, %v219
    %v276 = vpack.c.b16 %v222, %v220
    %v277 = vpack.c.b16 %v225, %v223
    %v278 = vpack.c.b16 %v226, %v224
    %v279 = vpack.c.b16 %v229, %v227
    %v280 = vpack.c.b16 %v230, %v228
    %v281 = vpack.c.b16 %v233, %v231
    %v282 = vpack.c.b16 %v234, %v232
    %v283 = vpack.c.b16 %v237, %v235
    %v284 = vpack.c.b16 %v238, %v236
    %v285 = vpack.c.b16 %v241, %v239
    %v286 = vpack.c.b16 %v242, %v240
    %v287 = vpack.c.b16 %v245, %v243
    %v288 = vpack.c.b16 %v246, %v244
    %v289 = vpack.c.b16 %v249, %v247
    %v290 = vpack.c.b16 %v250, %v248
    %v291 = vpack.c.b16 %v253, %v251
    %v292 = vpack.c.b16 %v254, %v252
    %v293 = vpack.c.b16 %v257, %v255
    %v294 = vpack.c.b16 %v258, %v256
    %v295 = vpack.c.b16 %v261, %v259
    %v296 = vpack.c.b16 %v262, %v260
    %v297 = vpack.c.b16 %v265, %v263
    %v298 = vpack.c.b16 %v266, %v264
    %331 = vmatprep.subr.bf16.mxu0 %v282
    %332 = vmatpush1.bf16.msra.mxu0 %v281
    %333 = vmatprep.subr.bf16.mxu0 %v280
    %334 = vmatpush1.bf16.msra.mxu0 %v279
    %335 = vmatprep.subr.bf16.mxu0 %v278
    %336 = vmatpush1.bf16.msra.mxu0 %v277
    %337 = vmatprep.subr.bf16.mxu0 %v276
    %338 = vmatpush1.bf16.msra.mxu0 %v275
    %339 = vmatprep.subr.bf16.mxu0 %v274
    %340 = vmatpush1.bf16.msra.mxu0 %v273
    %341 = vmatprep.subr.bf16.mxu0 %v272
    %342 = vmatpush1.bf16.msra.mxu0 %v271
    %343 = vmatprep.subr.bf16.mxu0 %v270
    %344 = vmatpush1.bf16.msra.mxu0 %v269
    %345 = vmatprep.subr.bf16.mxu0 %v268
    %346 = vmatpush1.bf16.msra.mxu0 %v267
    %347 = vmatprep.subr.bf16.mxu0 %v298
    %348 = vmatpush2.bf16.msra.mxu0 %v297
    %349 = vmatprep.subr.bf16.mxu0 %v296
    %350 = vmatpush2.bf16.msra.mxu0 %v295
    %351 = vmatprep.subr.bf16.mxu0 %v294
    %352 = vmatpush2.bf16.msra.mxu0 %v293
    %353 = vmatprep.subr.bf16.mxu0 %v292
    %354 = vmatpush2.bf16.msra.mxu0 %v291
    %355 = vmatprep.subr.bf16.mxu0 %v290
    %356 = vmatpush2.bf16.msra.mxu0 %v289
    %357 = vmatprep.subr.bf16.mxu0 %v288
    %358 = vmatpush2.bf16.msra.mxu0 %v287
    %359 = vmatprep.subr.bf16.mxu0 %v286
    %360 = vmatpush2.bf16.msra.mxu0 %v285
    %361 = vmatprep.subr.bf16.mxu0 %v284
    %362 = vmatpush2.bf16.msra.mxu0 %v283
    %363 = vmatprep.mubr.bf16.mxu0 %v127
    %364 = vmatmul.mubr.bf16.gmra.mxu0 %v126
    %v365 = vpop.f32.mrf.mxu0
    %v366 = vadd.f32 %v164, %v365
    %v367 = vpop.f32.mrf.mxu0
    %v368 = vadd.f32 %v168, %v367
    %v369 = vpop.f32.mrf.mxu0
    %v370 = vpop.f32.mrf.mxu0
    %371 = vdwg.mxu0
    %v372 = vmax.f32 %v366, 0.0
    %v373 = vmax.f32 %v368, 0.0
    %v374 = vpack.c.bf16 %v372, %v372
    %v375 = vpack.c.bf16 %v373, %v373
    %v376 = vld [vmem:[%s4] sm:$0xf]
    %v377 = vld [vmem:[%s4 + $0x4] sm:$0xf]
    %v378 = vld [vmem:[%s4 + $0x8] sm:$0xf]
    %v379 = vld [vmem:[%s4 + $0xc] sm:$0xf]
    %v380 = vld [vmem:[%s4 + $0x10] sm:$0xf]
    %v381 = vld [vmem:[%s4 + $0x14] sm:$0xf]
    %v382 = vld [vmem:[%s4 + $0x18] sm:$0xf]
    %v383 = vld [vmem:[%s4 + $0x1c] sm:$0xf]
    %v384 = vld [vmem:[%s4 + $0x20] sm:$0xf]
    %v385 = vld [vmem:[%s4 + $0x24] sm:$0xf]
    %v386 = vld [vmem:[%s4 + $0x28] sm:$0xf]
    %v387 = vld [vmem:[%s4 + $0x2c] sm:$0xf]
    %v388 = vld [vmem:[%s4 + $0x30] sm:$0xf]
    %v389 = vld [vmem:[%s4 + $0x34] sm:$0xf]
    %v390 = vld [vmem:[%s4 + $0x38] sm:$0xf]
    %v391 = vld [vmem:[%s4 + $0x3c] sm:$0xf]
    %v392 = vld [vmem:[%s4 + $0x40] sm:$0xf]
    %v393 = vld [vmem:[%s4 + $0x44] sm:$0xf]
    %v394 = vld [vmem:[%s4 + $0x48] sm:$0xf]
    %v395 = vld [vmem:[%s4 + $0x4c] sm:$0xf]
    %v396 = vld [vmem:[%s4 + $0x50] sm:$0xf]
    %v397 = vld [vmem:[%s4 + $0x54] sm:$0xf]
    %v398 = vld [vmem:[%s4 + $0x58] sm:$0xf]
    %v399 = vld [vmem:[%s4 + $0x5c] sm:$0xf]
    %v400 = vld [vmem:[%s4 + $0x60] sm:$0xf]
    %v401 = vld [vmem:[%s4 + $0x64] sm:$0xf]
    %v402 = vld [vmem:[%s4 + $0x68] sm:$0xf]
    %v403 = vld [vmem:[%s4 + $0x6c] sm:$0xf]
    %v404 = vld [vmem:[%s4 + $0x70] sm:$0xf]
    %v405 = vld [vmem:[%s4 + $0x74] sm:$0xf]
    %v406 = vld [vmem:[%s4 + $0x78] sm:$0xf]
    %v407 = vld [vmem:[%s4 + $0x7c] sm:$0xf]
    %v409 = vlaneseq
    %v410 = vshrl.u32 %v409, 7
    %v411 = vsub.s32 0, %v410
    %v412 = vrot.slane %v41, %v411
    %v446 = vunpack.c.l.b16 %v376
    %v447 = vunpack.c.l.b16 %v377
    %v448 = vunpack.c.l.b16 %v378
    %v449 = vunpack.c.l.b16 %v379
    %v450 = vunpack.c.l.b16 %v380
    %v451 = vunpack.c.l.b16 %v381
    %v452 = vunpack.c.l.b16 %v382
    %v453 = vunpack.c.l.b16 %v383
    %v454 = vunpack.c.l.b16 %v384
    %v455 = vunpack.c.l.b16 %v385
    %v456 = vunpack.c.l.b16 %v386
    %v457 = vunpack.c.l.b16 %v387
    %v458 = vunpack.c.l.b16 %v388
    %v459 = vunpack.c.l.b16 %v389
    %v460 = vunpack.c.l.b16 %v390
    %v461 = vunpack.c.l.b16 %v391
    %v462 = vunpack.c.l.b16 %v392
    %v463 = vunpack.c.l.b16 %v393
    %v464 = vunpack.c.l.b16 %v394
    %v465 = vunpack.c.l.b16 %v395
    %v466 = vunpack.c.l.b16 %v396
    %v467 = vunpack.c.l.b16 %v397
    %v468 = vunpack.c.l.b16 %v398
    %v469 = vunpack.c.l.b16 %v399
    %v470 = vunpack.c.l.b16 %v400
    %v471 = vunpack.c.l.b16 %v401
    %v472 = vunpack.c.l.b16 %v402
    %v473 = vunpack.c.l.b16 %v403
    %v474 = vunpack.c.l.b16 %v404
    %v475 = vunpack.c.l.b16 %v405
    %v476 = vunpack.c.l.b16 %v406
    %v477 = vunpack.c.l.b16 %v407
    %v478 = vpack.c.b16 %v447, %v446
    %v479 = vpack.c.b16 %v449, %v448
    %v480 = vpack.c.b16 %v451, %v450
    %v481 = vpack.c.b16 %v453, %v452
    %v482 = vpack.c.b16 %v455, %v454
    %v483 = vpack.c.b16 %v457, %v456
    %v484 = vpack.c.b16 %v459, %v458
    %v485 = vpack.c.b16 %v461, %v460
    %v486 = vpack.c.b16 %v463, %v462
    %v487 = vpack.c.b16 %v465, %v464
    %v488 = vpack.c.b16 %v467, %v466
    %v489 = vpack.c.b16 %v469, %v468
    %v490 = vpack.c.b16 %v471, %v470
    %v491 = vpack.c.b16 %v473, %v472
    %v492 = vpack.c.b16 %v475, %v474
    %v493 = vpack.c.b16 %v477, %v476
    %510 = vmatprep.subr.bf16.mxu0 0
    %511 = vmatpush1.bf16.msra.mxu0 %v485
    %512 = vmatprep.subr.bf16.mxu0 0
    %513 = vmatpush1.bf16.msra.mxu0 %v484
    %514 = vmatprep.subr.bf16.mxu0 0
    %515 = vmatpush1.bf16.msra.mxu0 %v483
    %516 = vmatprep.subr.bf16.mxu0 0
    %517 = vmatpush1.bf16.msra.mxu0 %v482
    %518 = vmatprep.subr.bf16.mxu0 0
    %519 = vmatpush1.bf16.msra.mxu0 %v481
    %520 = vmatprep.subr.bf16.mxu0 0
    %521 = vmatpush1.bf16.msra.mxu0 %v480
    %522 = vmatprep.subr.bf16.mxu0 0
    %523 = vmatpush1.bf16.msra.mxu0 %v479
    %524 = vmatprep.subr.bf16.mxu0 0
    %525 = vmatpush1.bf16.msra.mxu0 %v478
    %526 = vmatprep.subr.bf16.mxu0 0
    %527 = vmatpush2.bf16.msra.mxu0 %v493
    %528 = vmatprep.subr.bf16.mxu0 0
    %529 = vmatpush2.bf16.msra.mxu0 %v492
    %530 = vmatprep.subr.bf16.mxu0 0
    %531 = vmatpush2.bf16.msra.mxu0 %v491
    %532 = vmatprep.subr.bf16.mxu0 0
    %533 = vmatpush2.bf16.msra.mxu0 %v490
    %534 = vmatprep.subr.bf16.mxu0 0
    %535 = vmatpush2.bf16.msra.mxu0 %v489
    %536 = vmatprep.subr.bf16.mxu0 0
    %537 = vmatpush2.bf16.msra.mxu0 %v488
    %538 = vmatprep.subr.bf16.mxu0 0
    %539 = vmatpush2.bf16.msra.mxu0 %v487
    %540 = vmatprep.subr.bf16.mxu0 0
    %541 = vmatpush2.bf16.msra.mxu0 %v486
    %542 = vmatprep.mubr.bf16.mxu0 %v375
    %543 = vmatmul.mubr.bf16.gmra.mxu0 %v374
    %v544 = vpop.f32.mrf.mxu0
    %v545 = vadd.f32 %v412, %v544
    %v546 = vpop.f32.mrf.mxu0
    %v547 = vpop.f32.mrf.mxu0
    %v548 = vpop.f32.mrf.mxu0
    %549 = vdwg.mxu0
    %v550 = vtanh.pop %v545
    %v551 = vmul.f32 %v550, 11.0
    %v552 = vadd.f32 %v551, -9.0
    %v553 = vmul.f32 %v552, 1.442695
    %v554 = vpow.pop %v553
    %v555 = vld [vmem:[%s1] sm:$0xff]
    %557 = vrot.lane.b32.xlu0 %v554, 124
    %v558 = vpop.permute.xlu0 %557
    %v560 = vmul.f32 %v555, %v558
    %v561 = vadd.f32 %v545, %v560
    %v562 = vmul.f32 %v555, -0.5
    %v563 = vmul.f32 %v562, %v555
    %565 = vrot.lane.b32.xlu0 %v552, 124
    %v566 = vpop.permute.xlu0 %565
    %v568 = vsub.f32 %v563, %v566
    %vm569 = vcmask 31744
    %v570 = vsel %vm569, %v568, 0.0
    %571 = vadd.xlane.f32.xlu0 %v570
    %v572 = vpop.xlane.xlu0 %571
    %v573 = vsub.f32 %v572, 3.675754
    %v574 = vtanh.pop %v561
    %v575 = vmul.f32 %v574, %v574
    %v576 = vsub.f32 1.0, %v575
    %v577 = vmax.f32 %v576, 0.0
    %v578 = vadd.f32 %v577, 1e-06
    %v579 = vlog2.pop %v578
    %v580 = vmul.f32 %v579, 0.6931472
    %v581 = vsel %vm569, %v580, 0.0
    %582 = vadd.xlane.f32.xlu0 %v581
    %v583 = vpop.xlane.xlu0 %582
    %v584 = vsub.f32 %v573, %v583
    %586 = vrot.lane.b32.xlu0 %v574, 4
    %v587 = vpop.permute.xlu0 %586
    %v589 = vsel %vm569, %v550, %v587
    %vm590 = vcmask 64512
    %v591 = vsel %vm590, %v589, %v584
    %vm592 = vcmask 72704
    %v593 = vsel %vm592, %v591, 0.0
    %594 = vst [vmem:[#allocation5] sm:$0xff] %v593
    // Predicated region
    $region30: #{tpu_custom_call.1} parent=1 // pred_check
      _
    $region31: #{tpu_custom_call.1} parent=1 // pred_check_branch
      %596 = sbr.rel (0) target = $region33
    $region32: #{tpu_custom_call.1} parent=1 // pred_region
      %s598 = ssub.s32 128, 128
      %599 = vsyncadd [#allocation4], %s598
      %s601 = sshll.u32 [#allocation5], 4
      %s602 = int_to_ptr.vmem [resolvable:$true] %s601
      %604 = dma.vmem_to_hbm [thread:$0]  %s602, 128, %s6, [#allocation4]
    $region33: #{tpu_custom_call.1} parent=1 // pred_fallthru
      _
    // Predicated region
    $region34: #{tpu_custom_call.1} parent=1 // pred_check
      _
    $region35: #{tpu_custom_call.1} parent=1 // pred_check_branch
      %606 = sbr.rel (0) target = $region37
    $region36: #{tpu_custom_call.1} parent=1 // pred_region
      %607 = dma.done [#allocation4], 128
    $region37: #{tpu_custom_call.1} parent=1 // pred_fallthru
      _
    %608 = vsyncpa [#allocation3], 1
    %609 = vsyncpa [#allocation4], 1

</llo_original>
